<compile_context>
chip_gen: v5e
topology: v5e:2x2
jax: 0.10.0
libtpu: 0.0.40
codegen_flags: <defaults>
</compile_context>

<pallas_src>
import math
import functools

import jax
import jax.numpy as jnp
from jax import lax
from jax.experimental import pallas as pl
from jax.experimental.pallas import tpu as pltpu

_MIB = 1024 * 1024


def _sdpa_kernel(q_ref, k_ref, v_ref, out_ref, attn_ref, *, scale):
    # Block shapes: q_ref (1, TQ, E), k_ref/v_ref (1, S, E),
    #               out_ref (1, TQ, E), attn_ref (1, TQ, S).
    q = q_ref[0] * scale          # fold 1/sqrt(E) into Q: TQ*E muls, not TQ*S
    k = k_ref[0]                  # (S, E)
    v = v_ref[0]                  # (S, E)

    # scores = (Q*scale) @ K^T, contracting the embed axis directly so the MXU
    # consumes K without an XLU transpose; accumulate in f32 regardless of the
    # operand dtype (f32 or bf16).
    scores = lax.dot_general(
        q, k,
        dimension_numbers=(((1,), (1,)), ((), ())),
        preferred_element_type=jnp.float32,
    )                             # (TQ, S) f32

    # Numerically-stable softmax along the last axis, all in f32.
    m = jnp.max(scores, axis=-1, keepdims=True)
    e = jnp.exp(scores - m)
    denom = jnp.sum(e, axis=-1, keepdims=True)
    # Exact division (NOT pl.reciprocal(approx=True)): attn is a returned
    # output and must match PyTorch's softmax; the approx path's ~2^-12 error
    # exceeded the test tolerance.
    attn = e / denom

    # Single attn tensor: store it and reuse it (one cast) for the V matmul.
    attn_ref[0] = attn.astype(attn_ref.dtype)
    out = jnp.dot(attn.astype(v.dtype), v, preferred_element_type=jnp.float32)
    out_ref[0] = out.astype(out_ref.dtype)


def _vmem_capacity_bytes():
    """Per-core VMEM capacity; conservative 64 MiB (v7x/TC) if unavailable."""
    try:
        return int(pltpu.get_tpu_info().vmem_capacity_bytes)
    except Exception:
        return 64 * _MIB


def _make_kv_spec(S, E):
    """K/V block: same block for every q-tile -> resident, no re-DMA across qi.

    Its block index only changes with the outer batch axis, so double-buffering
    hides nothing; Buffered(1) halves the resident K/V footprint (one exposed
    S*E DMA per batch boundary, amortized over S/TQ q-tiles).
    """
    index_map = lambda b, qi: (b, 0, 0)
    buffered = getattr(pl, "Buffered", None)
    if buffered is not None:
        try:
            return pl.BlockSpec((1, S, E), index_map, pipeline_mode=buffered(1))
        except Exception:
            pass
    return pl.BlockSpec((1, S, E), index_map)


def _plan(S, E, in_bytes, attn_bytes, vmem_cap):
    """Pick the query tile TQ and the scoped-VMEM limit for that plan."""
    budget = int(0.70 * vmem_cap)
    kv_resident = 2 * S * E * in_bytes          # K + V, single-buffered

    def need(tq):
        q_tile = 2 * tq * E * in_bytes          # Q tile, double-buffered
        o_tile = 2 * tq * E * 4                 # output tile, double-buffered
        a_tile = 2 * tq * S * attn_bytes        # attn writeback, double-buffered
        interm = 3 * tq * S * 4                 # scores / exp / attn f32 temps
        return kv_resident + q_tile + o_tile + a_tile + interm

    if S <= 512 and need(S) <= budget:
        tq = S                                   # single query tile, no padding
    else:
        tq = max(8, min(512, (S // 8) * 8))      # largest multiple of 8 <= 512
        while tq > 8 and need(tq) > budget:
            tq -= 8
        # TODO(synk): if need(8) still exceeds the budget (huge S), switch to a
        # streamed K-tile axis + online softmax instead of resident K/V.

    vmem_limit = int(min(max(int(1.3 * need(tq)), 32 * _MIB),
                         int(0.9 * vmem_cap)))
    return tq, vmem_limit


def scaled_dot_product_attention(query, key, value, *, use_bf16=False,
                                 attn_dtype=None):
    """query/key/value: (B, S, E). Returns (output (B,S,E), attn (B,S,S)).

    use_bf16=True casts the matmul operands (and, by default, the attn output)
    to bfloat16 for native MXU rate and half the DMA traffic; accumulation and
    the softmax stay f32. Off by default for strict parity with the f32 module.
    """
    B, S, E = query.shape
    assert key.shape == (B, S, E) and value.shape == (B, S, E)

    scale = 1.0 / math.sqrt(E)
    in_dtype = jnp.bfloat16 if use_bf16 else query.dtype
    out_dtype = query.dtype
    attn_out_dtype = attn_dtype if attn_dtype is not None else (
        jnp.bfloat16 if use_bf16 else jnp.float32)

    in_bytes = jnp.dtype(in_dtype).itemsize
    attn_bytes = jnp.dtype(attn_out_dtype).itemsize
    TQ, vmem_limit = _plan(S, E, in_bytes, attn_bytes, _vmem_capacity_bytes())

    # Pad the query length up to a multiple of TQ (padded rows sliced off at
    # the end) instead of falling back to an O(S^2)-VMEM single tile.
    n_q_tiles = -(-S // TQ)
    S_q = n_q_tiles * TQ

    q = query.astype(in_dtype)
    k = key.astype(in_dtype)
    v = value.astype(in_dtype)
    if S_q != S:
        q = jnp.pad(q, ((0, 0), (0, S_q - S), (0, 0)))

    kernel = functools.partial(_sdpa_kernel, scale=scale)

    out_shapes = (
        jax.ShapeDtypeStruct((B, S_q, E), out_dtype),      # output
        jax.ShapeDtypeStruct((B, S_q, S), attn_out_dtype),  # attn
    )

    q_spec = pl.BlockSpec((1, TQ, E), lambda b, qi: (b, qi, 0))
    kv_spec = _make_kv_spec(S, E)
    out_specs = (
        pl.BlockSpec((1, TQ, E), lambda b, qi: (b, qi, 0)),
        pl.BlockSpec((1, TQ, S), lambda b, qi: (b, qi, 0)),
    )

    out, attn = pl.pallas_call(
        kernel,
        out_shape=out_shapes,
        grid_spec=pltpu.PrefetchScalarGridSpec(
            num_scalar_prefetch=0,
            grid=(B, n_q_tiles),
            in_specs=[q_spec, kv_spec, kv_spec],
            out_specs=out_specs,
        ),
        compiler_params=pltpu.CompilerParams(
            dimension_semantics=("parallel", "parallel"),
            vmem_limit_bytes=vmem_limit,
        ),
    )(q, k, v)

    if S_q != S:
        out = out[:, :S]
        attn = attn[:, :S]
    return out, attn


def _reference(query, key, value):
    E = query.shape[-1]
    scores = jnp.einsum("bqe,bke->bqk", query, key) / math.sqrt(E)
    attn = jax.nn.softmax(scores, axis=-1)
    out = jnp.einsum("bqk,bke->bqe", attn, value)
    return out, attn


if __name__ == "__main__":
    B, S, E = 2, 8, 32
    key0 = jax.random.PRNGKey(0)
    kq, kk, kv = jax.random.split(key0, 3)
    query = jax.random.normal(kq, (B, S, E), dtype=jnp.float32)
    keyt = jax.random.normal(kk, (B, S, E), dtype=jnp.float32)
    value = jax.random.normal(kv, (B, S, E), dtype=jnp.float32)

    out, attn = scaled_dot_product_attention(query, keyt, value)
    jax.block_until_ready((out, attn))

    ref_out, ref_attn = _reference(query, keyt, value)
    assert out.shape == (B, S, E) and attn.shape == (B, S, S)
    assert jnp.allclose(out, ref_out, atol=1e-4, rtol=1e-4)
    assert jnp.allclose(attn, ref_attn, atol=1e-4, rtol=1e-4)

    print("KERNEL_OK")
</pallas_src>

<mosaic_0001>
module attributes {stable_mosaic.version = 11 : i64} {
  func.func @_sdpa_kernel(%arg0: i32, %arg1: i32, %arg2: memref<1x8x32xf32, #tpu.memory_space<vmem>>, %arg3: memref<1x8x32xf32, #tpu.memory_space<vmem>>, %arg4: memref<1x8x32xf32, #tpu.memory_space<vmem>>, %arg5: memref<1x8x32xf32, #tpu.memory_space<vmem>>, %arg6: memref<1x8x8xf32, #tpu.memory_space<vmem>>) attributes {dimension_semantics = [#tpu.dimension_semantics<parallel>, #tpu.dimension_semantics<parallel>], iteration_bounds = array<i64: 2, 1>, scalar_prefetch = 0 : i64, scratch_operands = 0 : i64, tpu.core_type = #tpu.core_type<tc>, window_params = [{transform_indices = @transform_0, window_bounds = array<i64: 1, 8, 32>}, {pipeline_mode = #tpu.pipeline_mode<synchronous>, transform_indices = @transform_1, window_bounds = array<i64: 1, 8, 32>}, {pipeline_mode = #tpu.pipeline_mode<synchronous>, transform_indices = @transform_2, window_bounds = array<i64: 1, 8, 32>}, {transform_indices = @transform_3, window_bounds = array<i64: 1, 8, 32>}, {transform_indices = @transform_4, window_bounds = array<i64: 1, 8, 8>}]} {
    %c0 = arith.constant 0 : index
    %c0_0 = arith.constant 0 : index
    %c0_1 = arith.constant 0 : index
    %0 = vector.load %arg2[%c0, %c0_0, %c0_1] : memref<1x8x32xf32, #tpu.memory_space<vmem>>, vector<1x8x32xf32>
    %1 = vector.shape_cast %0 : vector<1x8x32xf32> to vector<8x32xf32>
    %cst = arith.constant 0.176776692 : f32
    %2 = vector.broadcast %cst : f32 to vector<8x32xf32>
    %3 = arith.mulf %1, %2 : vector<8x32xf32>
    %c0_2 = arith.constant 0 : index
    %c0_3 = arith.constant 0 : index
    %c0_4 = arith.constant 0 : index
    %4 = vector.load %arg3[%c0_2, %c0_3, %c0_4] : memref<1x8x32xf32, #tpu.memory_space<vmem>>, vector<1x8x32xf32>
    %5 = vector.shape_cast %4 : vector<1x8x32xf32> to vector<8x32xf32>
    %c0_5 = arith.constant 0 : index
    %c0_6 = arith.constant 0 : index
    %c0_7 = arith.constant 0 : index
    %6 = vector.load %arg4[%c0_5, %c0_6, %c0_7] : memref<1x8x32xf32, #tpu.memory_space<vmem>>, vector<1x8x32xf32>
    %7 = vector.shape_cast %6 : vector<1x8x32xf32> to vector<8x32xf32>
    %cst_8 = arith.constant dense<0.000000e+00> : vector<8x8xf32>
    %8 = tpu.matmul %3, %5, %cst_8 {dimension_numbers = #tpu.dot_dimension_numbers<[1], [1], [0], [0], [0, 0, 1, 0], [], []>} : vector<8x32xf32>, vector<8x32xf32>, vector<8x8xf32> -> vector<8x8xf32>
    %cst_9 = arith.constant dense<0xFF800000> : vector<8xf32>
    %9 = vector.multi_reduction <maximumf>, %8, %cst_9 [1] : vector<8x8xf32> to vector<8xf32>
    %10 = vector.shape_cast %9 : vector<8xf32> to vector<8x1xf32>
    %11 = vector.broadcast %10 : vector<8x1xf32> to vector<8x8xf32>
    %12 = arith.subf %8, %11 : vector<8x8xf32>
    %13 = math.exp %12 : vector<8x8xf32>
    %cst_10 = arith.constant dense<0.000000e+00> : vector<8xf32>
    %14 = vector.multi_reduction <add>, %13, %cst_10 [1] : vector<8x8xf32> to vector<8xf32>
    %15 = vector.shape_cast %14 : vector<8xf32> to vector<8x1xf32>
    %16 = vector.broadcast %15 : vector<8x1xf32> to vector<8x8xf32>
    %17 = arith.divf %13, %16 : vector<8x8xf32>
    %c0_11 = arith.constant 0 : index
    %c0_12 = arith.constant 0 : index
    %c0_13 = arith.constant 0 : index
    %18 = vector.load %arg6[%c0_11, %c0_12, %c0_13] : memref<1x8x8xf32, #tpu.memory_space<vmem>>, vector<1x8x8xf32>
    %19 = vector.shape_cast %18 : vector<1x8x8xf32> to vector<8x8xf32>
    %20 = vector.shape_cast %17 : vector<8x8xf32> to vector<1x8x8xf32>
    tpu.vector_store %arg6[%c0_11, %c0_12, %c0_13], %20 {strides = array<i32>} : memref<1x8x8xf32, #tpu.memory_space<vmem>>, vector<1x8x8xf32>,
    %cst_14 = arith.constant dense<0.000000e+00> : vector<8x32xf32>
    %21 = tpu.matmul %17, %7, %cst_14 {dimension_numbers = #tpu.dot_dimension_numbers<[1], [0], [0], [1], [0, 0, 1, 1], [], []>} : vector<8x8xf32>, vector<8x32xf32>, vector<8x32xf32> -> vector<8x32xf32>
    %c0_15 = arith.constant 0 : index
    %c0_16 = arith.constant 0 : index
    %c0_17 = arith.constant 0 : index
    %22 = vector.load %arg5[%c0_15, %c0_16, %c0_17] : memref<1x8x32xf32, #tpu.memory_space<vmem>>, vector<1x8x32xf32>
    %23 = vector.shape_cast %22 : vector<1x8x32xf32> to vector<8x32xf32>
    %24 = vector.shape_cast %21 : vector<8x32xf32> to vector<1x8x32xf32>
    tpu.vector_store %arg5[%c0_15, %c0_16, %c0_17], %24 {strides = array<i32>} : memref<1x8x32xf32, #tpu.memory_space<vmem>>, vector<1x8x32xf32>,
    return
  }
  func.func @transform_0(%arg0: i32, %arg1: i32) -> (i32, i32, i32) {
    %c0_i32 = arith.constant 0 : i32
    %c0_i32_0 = arith.constant 0 : i32
    return %arg0, %arg1, %c0_i32 : i32, i32, i32
  }
  func.func @transform_1(%arg0: i32, %arg1: i32) -> (i32, i32, i32) {
    %c0_i32 = arith.constant 0 : i32
    %c0_i32_0 = arith.constant 0 : i32
    %c0_i32_1 = arith.constant 0 : i32
    return %arg0, %c0_i32, %c0_i32_0 : i32, i32, i32
  }
  func.func @transform_2(%arg0: i32, %arg1: i32) -> (i32, i32, i32) {
    %c0_i32 = arith.constant 0 : i32
    %c0_i32_0 = arith.constant 0 : i32
    %c0_i32_1 = arith.constant 0 : i32
    return %arg0, %c0_i32, %c0_i32_0 : i32, i32, i32
  }
  func.func @transform_3(%arg0: i32, %arg1: i32) -> (i32, i32, i32) {
    %c0_i32 = arith.constant 0 : i32
    %c0_i32_0 = arith.constant 0 : i32
    return %arg0, %arg1, %c0_i32 : i32, i32, i32
  }
  func.func @transform_4(%arg0: i32, %arg1: i32) -> (i32, i32, i32) {
    %c0_i32 = arith.constant 0 : i32
    %c0_i32_0 = arith.constant 0 : i32
    return %arg0, %arg1, %c0_i32 : i32, i32, i32
  }
}

</mosaic_0001>

<llo_original>
// kernel: tpu_custom_call.1
$region0: #{tpu_custom_call.1}
  #allocation0 [shape = 'u32[]', space=smem, size = 0x4, offset = 0x4, fixed_abs, tag = 'smem constant byte address 0x4 - core index']
  #allocation1 [shape = 'u32[72,128]{1,0:T(1,128)}', space=vmem, size = 0x9000, scoped, tag = 'internal scratch']
  %s0 = inlined_call_operand.hbm [shape: f32[2,8,32], index: 0, kind: input, shape index: {}]
  %s1 = inlined_call_operand.hbm [shape: f32[2,8,32], index: 1, kind: input, shape index: {}]
  %s2 = inlined_call_operand.hbm [shape: f32[2,8,32], index: 2, kind: input, shape index: {}]
  %s3 = inlined_call_operand.hbm [shape: f32[2,8,32], index: 3, kind: output, shape index: {0}]
  %s4 = inlined_call_operand.hbm [shape: f32[2,8,8], index: 4, kind: output, shape index: {1}]
  %5 = xla_tuple %s3, %s4
  %s6 = sld [smem:[#allocation0]]
  $region65: #{tpu_custom_call.1} parent=0
    _
  %s8 = ssub.s32 1, %s6
  %s9 = scalar_select 0, %s8, %s6
  $region1: #{tpu_custom_call.1} parent=0
    #allocation2 [shape = 'u8[8192]{0}', space=vmem, size = 0x2000, scoped, tag = 'input window, operand 0']
    #allocation3 [shape = 's32[2]{0}', space=sflag, size = 0x8, scoped, tag = 'scoped memory for tpu_custom_call.1']
    #allocation4 [shape = 's32[2]{0}', space=sflag, size = 0x8, scoped, tag = 'scoped memory for tpu_custom_call.1']
    #allocation5 [shape = 'u8[4096]{0}', space=vmem, size = 0x1000, scoped, tag = 'input window, operand 1, single buffered']
    #allocation6 [shape = 's32[1]{0}', space=sflag, size = 0x4, scoped, tag = 'scoped memory for tpu_custom_call.1']
    #allocation7 [shape = 'u8[4096]{0}', space=vmem, size = 0x1000, scoped, tag = 'input window, operand 2, single buffered']
    #allocation8 [shape = 'u8[8192]{0}', space=vmem, size = 0x2000, scoped, tag = 'output window, operand 0']
    #allocation9 [shape = 'u8[8192]{0}', space=vmem, size = 0x2000, scoped, tag = 'output window, operand 1']
    #allocation10 [shape = 's32[2]{0}', space=sflag, size = 0x8, scoped, tag = 'scoped memory for tpu_custom_call.1']
    %10 = vsyncpa [#allocation3], 0
    %s11 = scalar_lea.sflag [#allocation3], 1
    %12 = vsyncpa %s11, 0
    %13 = vsyncpa [#allocation6], 0
    %14 = vsyncpa [#allocation4], 0
    %s15 = scalar_lea.sflag [#allocation4], 1
    %16 = vsyncpa %s15, 0
    %17 = vsyncpa [#allocation10], 0
    %s18 = scalar_lea.sflag [#allocation10], 1
    %19 = vsyncpa %s18, 0
    loop: start=0, step=1, limit=4
    $region2: #{tpu_custom_call.1} parent=1 // loop_pre_header
      _
    $region3: #{tpu_custom_call.1} parent=1 // loop_header
      %s21 = sphi 0, %s25
      %p22 = scmp.ge.s32.totalorder %s21, 4
      %s28 = sphi 0, %s40
      %s29 = sphi 0, %s36
      %s30 = sphi 0, %s28
      %s31 = sphi 0, %s29
      %s32 = sphi 0, %s30
      %s33 = sphi 0, %s31
      %s45 = sphi 0, %s47
      %s48 = sphi 0, %s45
      %s49 = sphi 0, %s48
      %s65 = sphi 0, %s49
      %s71 = sphi 0, %s73
      %s74 = sphi 0, %s71
      %s75 = sphi 0, %s74
      %s91 = sphi 0, %s75
      %s97 = sphi 0, %s99
      %s100 = sphi 0, %s97
      %s101 = sphi 0, %s100
      %s117 = sphi 0, %s101
      %s125 = sphi 0, %s127
      %s128 = sphi 0, %s125
      %s129 = sphi 0, %s128
      %s145 = sphi 0, %s129
      %s153 = sphi 0, %s155
      %s156 = sphi 0, %s153
      %s157 = sphi 0, %s156
      %s173 = sphi 0, %s157
    $region4: #{tpu_custom_call.1} parent=1 // loop_header_branch
      %24 = sbr.rel (%p22) target = $region8
    $region5: #{tpu_custom_call.1} parent=1 // loop_body
      %s26 = ssub.s32 %s21, 1
      %s27 = ssub.s32 %s21, 2
      %s34 = sadd.s32 1, %s29
      %p35 = scmp.ge.s32.totalorder %s34, 1
      %s36 = scalar_select %p35, 0, %s34
      %s37 = sadd.s32 1, %s28
      %s38 = scalar_select %p35, %s37, %s28
      %p39 = scmp.ge.s32.totalorder %s38, 2
      %s40 = scalar_select %p39, 0, %s38
      %s41 = ssub.s32 %s28, %s40
      %s42 = ssub.s32 %s29, %s36
      %s43 = sor.u32 %s41, %s42
      %p44 = scmp.eq.s32.totalorder %s43, 0
      %s46 = sadd.s32 %s45, 1
      %s47 = scalar_select %p44, %s45, %s46
      %p50 = pneg %p44
      %p51 = scmp.eq.s32.totalorder %s21, 1
      %p52 = por %p50, %p51
      %p53 = scmp.ne.s32.totalorder %s45, %s48
      %p54 = scmp.eq.s32.totalorder %s21, 0
      %p55 = por %p53, %p54
      %p56 = scmp.ne.s32.totalorder %s45, %s48
      %p57 = scmp.eq.s32.totalorder %s26, 1
      %p58 = por %p56, %p57
      %p59 = scmp.ne.s32.totalorder %s48, %s49
      %p60 = scmp.eq.s32.totalorder %s26, 0
      %p61 = por %p59, %p60
      %p62 = scmp.ne.s32.totalorder %s48, %s49
      %p63 = scmp.eq.s32.totalorder %s27, 1
      %p64 = por %p62, %p63
      %p66 = scmp.ne.s32.totalorder %s49, %s65
      %p67 = scmp.eq.s32.totalorder %s27, 0
      %p68 = por %p66, %p67
      %s69 = ssub.s32 %s28, %s40
      %p70 = scmp.eq.s32.totalorder %s69, 0
      %s72 = sadd.s32 %s71, 1
      %s73 = scalar_select %p70, %s71, %s72
      %p76 = pneg %p70
      %p77 = scmp.eq.s32.totalorder %s21, 1
      %p78 = por %p76, %p77
      %p79 = scmp.ne.s32.totalorder %s71, %s74
      %p80 = scmp.eq.s32.totalorder %s21, 0
      %p81 = por %p79, %p80
      %p82 = scmp.ne.s32.totalorder %s71, %s74
      %p83 = scmp.eq.s32.totalorder %s26, 1
      %p84 = por %p82, %p83
      %p85 = scmp.ne.s32.totalorder %s74, %s75
      %p86 = scmp.eq.s32.totalorder %s26, 0
      %p87 = por %p85, %p86
      %p88 = scmp.ne.s32.totalorder %s74, %s75
      %p89 = scmp.eq.s32.totalorder %s27, 1
      %p90 = por %p88, %p89
      %p92 = scmp.ne.s32.totalorder %s75, %s91
      %p93 = scmp.eq.s32.totalorder %s27, 0
      %p94 = por %p92, %p93
      %s95 = ssub.s32 %s28, %s40
      %p96 = scmp.eq.s32.totalorder %s95, 0
      %s98 = sadd.s32 %s97, 1
      %s99 = scalar_select %p96, %s97, %s98
      %p102 = pneg %p96
      %p103 = scmp.eq.s32.totalorder %s21, 1
      %p104 = por %p102, %p103
      %p105 = scmp.ne.s32.totalorder %s97, %s100
      %p106 = scmp.eq.s32.totalorder %s21, 0
      %p107 = por %p105, %p106
      %p108 = scmp.ne.s32.totalorder %s97, %s100
      %p109 = scmp.eq.s32.totalorder %s26, 1
      %p110 = por %p108, %p109
      %p111 = scmp.ne.s32.totalorder %s100, %s101
      %p112 = scmp.eq.s32.totalorder %s26, 0
      %p113 = por %p111, %p112
      %p114 = scmp.ne.s32.totalorder %s100, %s101
      %p115 = scmp.eq.s32.totalorder %s27, 1
      %p116 = por %p114, %p115
      %p118 = scmp.ne.s32.totalorder %s101, %s117
      %p119 = scmp.eq.s32.totalorder %s27, 0
      %p120 = por %p118, %p119
      %s121 = ssub.s32 %s28, %s40
      %s122 = ssub.s32 %s29, %s36
      %s123 = sor.u32 %s121, %s122
      %p124 = scmp.eq.s32.totalorder %s123, 0
      %s126 = sadd.s32 %s125, 1
      %s127 = scalar_select %p124, %s125, %s126
      %p130 = pneg %p124
      %p131 = scmp.eq.s32.totalorder %s21, 1
      %p132 = por %p130, %p131
      %p133 = scmp.ne.s32.totalorder %s125, %s128
      %p134 = scmp.eq.s32.totalorder %s21, 0
      %p135 = por %p133, %p134
      %p136 = scmp.ne.s32.totalorder %s125, %s128
      %p137 = scmp.eq.s32.totalorder %s26, 1
      %p138 = por %p136, %p137
      %p139 = scmp.ne.s32.totalorder %s128, %s129
      %p140 = scmp.eq.s32.totalorder %s26, 0
      %p141 = por %p139, %p140
      %p142 = scmp.ne.s32.totalorder %s128, %s129
      %p143 = scmp.eq.s32.totalorder %s27, 1
      %p144 = por %p142, %p143
      %p146 = scmp.ne.s32.totalorder %s129, %s145
      %p147 = scmp.eq.s32.totalorder %s27, 0
      %p148 = por %p146, %p147
      %s149 = ssub.s32 %s28, %s40
      %s150 = ssub.s32 %s29, %s36
      %s151 = sor.u32 %s149, %s150
      %p152 = scmp.eq.s32.totalorder %s151, 0
      %s154 = sadd.s32 %s153, 1
      %s155 = scalar_select %p152, %s153, %s154
      %p158 = pneg %p152
      %p159 = scmp.eq.s32.totalorder %s21, 1
      %p160 = por %p158, %p159
      %p161 = scmp.ne.s32.totalorder %s153, %s156
      %p162 = scmp.eq.s32.totalorder %s21, 0
      %p163 = por %p161, %p162
      %p164 = scmp.ne.s32.totalorder %s153, %s156
      %p165 = scmp.eq.s32.totalorder %s26, 1
      %p166 = por %p164, %p165
      %p167 = scmp.ne.s32.totalorder %s156, %s157
      %p168 = scmp.eq.s32.totalorder %s26, 0
      %p169 = por %p167, %p168
      %p170 = scmp.ne.s32.totalorder %s156, %s157
      %p171 = scmp.eq.s32.totalorder %s27, 1
      %p172 = por %p170, %p171
      %p174 = scmp.ne.s32.totalorder %s157, %s173
      %p175 = scmp.eq.s32.totalorder %s27, 0
      %p176 = por %p174, %p175
      %p177 = scmp.le.s32.totalorder 1, %s21
      %p178 = scmp.lt.s32.totalorder %s21, 3
      %p179 = pnand %p177, %p178
      %p180 = pneg %p179
      // Predicated region
      $region9: #{tpu_custom_call.1} parent=5 // pred_check
        _
      $region10: #{tpu_custom_call.1} parent=5 // pred_check_branch
        %182 = sbr.rel (%p179) target = $region12
      $region11: #{tpu_custom_call.1} parent=5 // pred_region
        %s183 = ssub.s32 %s21, 1
        // Predicated region
        $region13: #{tpu_custom_call.1} parent=11 // pred_check
          %p184 = pneg %p87
        $region14: #{tpu_custom_call.1} parent=11 // pred_check_branch
          %186 = sbr.rel (%p184) target = $region16
        $region15: #{tpu_custom_call.1} parent=11 // pred_region
          %188 = vsyncadd [#allocation6], 0
          %s189 = smul.addr %s30, 8
          %s190 = scalar_lea.hbm %s1, %s189
          %s192 = sshll.u32 %s190, 4
          %s193 = int_to_ptr.hbm [resolvable:$true] %s192
          %s194 = sshll.u32 [#allocation5], 4
          %s195 = int_to_ptr.vmem [resolvable:$true] %s194
          %197 = dma.hbm_to_vmem [thread:$0]  %s193, 128, %s195, [#allocation6]
        $region16: #{tpu_custom_call.1} parent=11 // pred_fallthru
          _
        // Predicated region
        $region17: #{tpu_custom_call.1} parent=11 // pred_check
          %p198 = pneg %p113
        $region18: #{tpu_custom_call.1} parent=11 // pred_check_branch
          %200 = sbr.rel (%p198) target = $region20
        $region19: #{tpu_custom_call.1} parent=11 // pred_region
          %202 = vsyncadd [#allocation6], 0
          %s203 = smul.addr %s30, 8
          %s204 = scalar_lea.hbm %s2, %s203
          %s206 = sshll.u32 %s204, 4
          %s207 = int_to_ptr.hbm [resolvable:$true] %s206
          %s208 = sshll.u32 [#allocation7], 4
          %s209 = int_to_ptr.vmem [resolvable:$true] %s208
          %211 = dma.hbm_to_vmem [thread:$0]  %s207, 128, %s209, [#allocation6]
        $region20: #{tpu_custom_call.1} parent=11 // pred_fallthru
          _
      $region12: #{tpu_custom_call.1} parent=5 // pred_fallthru
        _
      %p212 = scmp.lt.s32.totalorder %s21, 2
      // Predicated region
      $region21: #{tpu_custom_call.1} parent=5 // pred_check
        %p213 = pneg %p212
      $region22: #{tpu_custom_call.1} parent=5 // pred_check_branch
        %215 = sbr.rel (%p213) target = $region24
      $region23: #{tpu_custom_call.1} parent=5 // pred_region
        // Predicated region
        $region25: #{tpu_custom_call.1} parent=23 // pred_check
          %p216 = pneg %p55
        $region26: #{tpu_custom_call.1} parent=23 // pred_check_branch
          %218 = sbr.rel (%p216) target = $region28
        $region27: #{tpu_custom_call.1} parent=23 // pred_region
          %s219 = sand.u32 %s45, 1
          %s220 = scalar_lea.sflag [#allocation3], %s219
          %s221 = sand.u32 %s45, 1
          %s222 = smul.addr %s221, 8
          %s223 = scalar_lea.vmem [#allocation2], %s222
          %225 = vsyncadd %s220, 0
          %s226 = sadd.s32 %s29, %s28
          %s227 = smul.addr %s226, 8
          %s228 = scalar_lea.hbm %s0, %s227
          %s230 = sshll.u32 %s228, 4
          %s231 = int_to_ptr.hbm [resolvable:$true] %s230
          %s232 = sshll.u32 %s223, 4
          %s233 = int_to_ptr.vmem [resolvable:$true] %s232
          %235 = dma.hbm_to_vmem [thread:$0]  %s231, 128, %s233, %s220
        $region28: #{tpu_custom_call.1} parent=23 // pred_fallthru
          _
      $region24: #{tpu_custom_call.1} parent=5 // pred_fallthru
        _
      %p236 = scmp.le.s32.totalorder 1, %s21
      %p237 = scmp.lt.s32.totalorder %s21, 3
      %p238 = pnand %p236, %p237
      %p239 = pneg %p238
      // Predicated region
      $region29: #{tpu_custom_call.1} parent=5 // pred_check
        _
      $region30: #{tpu_custom_call.1} parent=5 // pred_check_branch
        %241 = sbr.rel (%p238) target = $region32
      $region31: #{tpu_custom_call.1} parent=5 // pred_region
        %s242 = ssub.s32 %s21, 1
        %s243 = sand.u32 %s48, 1
        %s244 = scalar_lea.sflag [#allocation3], %s243
        %s245 = sand.u32 %s48, 1
        %s246 = smul.addr %s245, 8
        %s247 = scalar_lea.vmem [#allocation2], %s246
        // Predicated region
        $region33: #{tpu_custom_call.1} parent=31 // pred_check
          %p248 = pneg %p61
        $region34: #{tpu_custom_call.1} parent=31 // pred_check_branch
          %250 = sbr.rel (%p248) target = $region36
        $region35: #{tpu_custom_call.1} parent=31 // pred_region
          %252 = dma.done %s244, 128
        $region36: #{tpu_custom_call.1} parent=31 // pred_fallthru
          _
        // Predicated region
        $region37: #{tpu_custom_call.1} parent=31 // pred_check
          %p253 = pneg %p87
        $region38: #{tpu_custom_call.1} parent=31 // pred_check_branch
          %255 = sbr.rel (%p253) target = $region40
        $region39: #{tpu_custom_call.1} parent=31 // pred_region
          %257 = dma.done [#allocation6], 128
        $region40: #{tpu_custom_call.1} parent=31 // pred_fallthru
          _
        // Predicated region
        $region41: #{tpu_custom_call.1} parent=31 // pred_check
          %p258 = pneg %p113
        $region42: #{tpu_custom_call.1} parent=31 // pred_check_branch
          %260 = sbr.rel (%p258) target = $region44
        $region43: #{tpu_custom_call.1} parent=31 // pred_region
          %262 = dma.done [#allocation6], 128
        $region44: #{tpu_custom_call.1} parent=31 // pred_fallthru
          _
        %s263 = sand.u32 %s48, 1
        %s264 = scalar_lea.sflag [#allocation3], %s263
        %s265 = sand.u32 %s48, 1
        %s266 = smul.addr %s265, 8
        %s267 = scalar_lea.vmem [#allocation2], %s266
        %p268 = pneg %p61
        %p269 = pneg %p58
        %p270 = pneg %p87
        %p271 = pneg %p84
        %p272 = pneg %p113
        %p273 = pneg %p110
        %p274 = pneg %p141
        %p275 = pneg %p138
        %s276 = sand.u32 %s128, 1
        %s277 = scalar_lea.sflag [#allocation4], %s276
        %s278 = sand.u32 %s128, 1
        %s279 = smul.addr %s278, 8
        %s280 = scalar_lea.vmem [#allocation8], %s279
        %p281 = pneg %p169
        %p282 = pneg %p166
        %s283 = sand.u32 %s156, 1
        %s284 = scalar_lea.sflag [#allocation10], %s283
        %s285 = sand.u32 %s156, 1
        %s286 = smul.addr %s285, 8
        %s287 = scalar_lea.vmem [#allocation9], %s286
        %v288 = vld [vmem:[%s247] sm:$0xff]
        %v289 = vmul.f32 %v288, 0.17677669
        %v290 = vld [vmem:[#allocation5] sm:$0xff]
        %v291 = vld [vmem:[#allocation7] sm:$0xff]
        %vm292 = vcmask 261120
        %v294 = vsel %vm292, %v289, 0
        %v297 = vsel %vm292, %v290, 0
        %299 = vmatpush.xpose.msra.mxu0 0.0
        %300 = vmatpush.xpose.msra.mxu0 0.0
        %301 = vmatpush.xpose.msra.mxu0 0.0
        %302 = vmatpush.xpose.msra.mxu0 0.0
        %303 = vmatpush.xpose.msra.mxu0 0.0
        %304 = vmatpush.xpose.msra.mxu0 0.0
        %305 = vmatpush.xpose.msra.mxu0 0.0
        %306 = vmatpush.xpose.msra.mxu0 0.0
        %307 = vmatpush.xpose.msra.mxu0 0.0
        %308 = vmatpush.xpose.msra.mxu0 0.0
        %309 = vmatpush.xpose.msra.mxu0 0.0
        %310 = vmatpush.xpose.msra.mxu0 0.0
        %311 = vmatpush.xpose.msra.mxu0 0.0
        %312 = vmatpush.xpose.msra.mxu0 0.0
        %313 = vmatpush.xpose.msra.mxu0 0.0
        %314 = vmatpush.xpose.msra.mxu0 %v297
        %315 = vmatmul.f32.gmra.mxu0 %v294
        %v316 = vpop.f32.mrf.mxu0
        %v317 = vadd.f32 0.0, %v316
        %318 = vdwg.mxu0
        %vm319 = vcmask 64512
        %v320 = vsel %vm319, %v317, -inf
        %321 = vmax.xlane.f32.xlu0 %v320
        %v322 = vpop.xlane.xlu0 %321
        %v323 = vsub.f32 %v317, %v322
        %v324 = vmul.f32 %v323, 1.442695
        %v325 = vpow.pop %v324
        %v326 = vsel %vm319, %v325, 0.0
        %327 = vadd.xlane.f32.xlu0 %v326
        %v328 = vpop.xlane.xlu0 %327
        %v329 = vrcp.pop %v328
        %v330 = vmul.f32 %v328, %v329
        %v331 = vsub.f32 1.0, %v330
        %v332 = vmul.f32 %v329, %v331
        %v333 = vadd.f32 %v329, %v332
        %vm334 = vweird.f32 %v328
        %vm335 = vweird.f32 %v329
        %vm336 = vmor %vm334, %vm335
        %v337 = vsel %vm336, %v329, %v333
        %v338 = vand.u32 2147483647, %v328
        %vm339 = vcmp.eq.f32.partialorder %v338, 8.507059e+37
        %v340 = vand.u32 %v328, 2147483648
        %v341 = vor.u32 1.1754944e-38, %v340
        %v342 = vsel %vm339, %v341, %v337
        %v343 = vmul.f32 %v325, %v342
        %344 = vst.msk [vmem:[%s287] sm:$0xff] %vm319, %v343
        %v346 = vsel %vm319, %v343, 0
        %348 = vmatpush.msra.mxu0 0.0
        %349 = vmatpush.msra.mxu0 0.0
        %350 = vmatpush.msra.mxu0 0.0
        %351 = vmatpush.msra.mxu0 0.0
        %352 = vmatpush.msra.mxu0 0.0
        %353 = vmatpush.msra.mxu0 0.0
        %354 = vmatpush.msra.mxu0 0.0
        %355 = vmatpush.msra.mxu0 0.0
        %356 = vmatpush.msra.mxu0 0.0
        %357 = vmatpush.msra.mxu0 0.0
        %358 = vmatpush.msra.mxu0 0.0
        %359 = vmatpush.msra.mxu0 0.0
        %360 = vmatpush.msra.mxu0 0.0
        %361 = vmatpush.msra.mxu0 0.0
        %362 = vmatpush.msra.mxu0 0.0
        %363 = vmatpush.msra.mxu0 %v291
        %364 = vmatmul.f32.gmra.mxu0 %v346
        %v365 = vpop.f32.mrf.mxu0
        %v366 = vadd.f32 0.0, %v365
        %367 = vdwg.mxu0
        %368 = vst.msk [vmem:[%s280] sm:$0xff] %vm292, %v366
        %s369 = sand.u32 %s128, 1
        %s370 = scalar_lea.sflag [#allocation4], %s369
        %s371 = sand.u32 %s128, 1
        %s372 = smul.addr %s371, 8
        %s373 = scalar_lea.vmem [#allocation8], %s372
        %s374 = sand.u32 %s156, 1
        %s375 = scalar_lea.sflag [#allocation10], %s374
        %s376 = sand.u32 %s156, 1
        %s377 = smul.addr %s376, 8
        %s378 = scalar_lea.vmem [#allocation9], %s377
        // Predicated region
        $region45: #{tpu_custom_call.1} parent=31 // pred_check
          %p379 = pneg %p138
        $region46: #{tpu_custom_call.1} parent=31 // pred_check_branch
          %381 = sbr.rel (%p379) target = $region48
        $region47: #{tpu_custom_call.1} parent=31 // pred_region
          %383 = vsyncadd %s370, 0
          %s384 = sadd.s32 %s31, %s30
          %s385 = smul.addr %s384, 8
          %s386 = scalar_lea.hbm %s3, %s385
          %s388 = sshll.u32 %s373, 4
          %s389 = int_to_ptr.vmem [resolvable:$true] %s388
          %s390 = sshll.u32 %s386, 4
          %s391 = int_to_ptr.hbm [resolvable:$true] %s390
          %393 = dma.vmem_to_hbm [thread:$0]  %s389, 128, %s391, %s370
        $region48: #{tpu_custom_call.1} parent=31 // pred_fallthru
          _
        // Predicated region
        $region49: #{tpu_custom_call.1} parent=31 // pred_check
          %p394 = pneg %p166
        $region50: #{tpu_custom_call.1} parent=31 // pred_check_branch
          %396 = sbr.rel (%p394) target = $region52
        $region51: #{tpu_custom_call.1} parent=31 // pred_region
          %398 = vsyncadd %s375, 0
          %s399 = sadd.s32 %s31, %s30
          %s400 = smul.addr %s399, 8
          %s401 = scalar_lea.hbm %s4, %s400
          %s403 = sshll.u32 %s378, 4
          %s404 = int_to_ptr.vmem [resolvable:$true] %s403
          %s405 = sshll.u32 %s401, 4
          %s406 = int_to_ptr.hbm [resolvable:$true] %s405
          %408 = dma.vmem_to_hbm [thread:$0]  %s404, 128, %s406, %s375
        $region52: #{tpu_custom_call.1} parent=31 // pred_fallthru
          _
      $region32: #{tpu_custom_call.1} parent=5 // pred_fallthru
        _
      %p409 = scmp.le.s32.totalorder 2, %s21
      // Predicated region
      $region53: #{tpu_custom_call.1} parent=5 // pred_check
        %p410 = pneg %p409
      $region54: #{tpu_custom_call.1} parent=5 // pred_check_branch
        %412 = sbr.rel (%p410) target = $region56
      $region55: #{tpu_custom_call.1} parent=5 // pred_region
        %s413 = ssub.s32 %s21, 2
        // Predicated region
        $region57: #{tpu_custom_call.1} parent=55 // pred_check
          %p414 = pneg %p144
        $region58: #{tpu_custom_call.1} parent=55 // pred_check_branch
          %416 = sbr.rel (%p414) target = $region60
        $region59: #{tpu_custom_call.1} parent=55 // pred_region
          %s417 = sand.u32 %s129, 1
          %s418 = scalar_lea.sflag [#allocation4], %s417
          %s419 = sand.u32 %s129, 1
          %s420 = smul.addr %s419, 8
          %s421 = scalar_lea.vmem [#allocation8], %s420
          %423 = dma.done %s418, 128
        $region60: #{tpu_custom_call.1} parent=55 // pred_fallthru
          _
        // Predicated region
        $region61: #{tpu_custom_call.1} parent=55 // pred_check
          %p424 = pneg %p172
        $region62: #{tpu_custom_call.1} parent=55 // pred_check_branch
          %426 = sbr.rel (%p424) target = $region64
        $region63: #{tpu_custom_call.1} parent=55 // pred_region
          %s427 = sand.u32 %s157, 1
          %s428 = scalar_lea.sflag [#allocation10], %s427
          %s429 = sand.u32 %s157, 1
          %s430 = smul.addr %s429, 8
          %s431 = scalar_lea.vmem [#allocation9], %s430
          %433 = dma.done %s428, 128
        $region64: #{tpu_custom_call.1} parent=55 // pred_fallthru
          _
      $region56: #{tpu_custom_call.1} parent=5 // pred_fallthru
        _
    $region6: #{tpu_custom_call.1} parent=1 // loop_footer
      %s25 = sadd.s32 1, %s21
    $region7: #{tpu_custom_call.1} parent=1 // loop_footer_branch
      %20 = sbr.rel target = $region3
    $region8: #{tpu_custom_call.1} parent=1 // loop_exit
      _
    %434 = vsyncpa [#allocation3], 1
    %s435 = scalar_lea.sflag [#allocation3], 1
    %436 = vsyncpa %s435, 1
    %437 = vsyncpa [#allocation6], 1
    %438 = vsyncpa [#allocation4], 1
    %s439 = scalar_lea.sflag [#allocation4], 1
    %440 = vsyncpa %s439, 1
    %441 = vsyncpa [#allocation10], 1
    %s442 = scalar_lea.sflag [#allocation10], 1
    %443 = vsyncpa %s442, 1

</llo_original>
